<compile_context>
chip_gen: v7x
topology: tpu7x:2x2x1
jax: 0.10.0
libtpu: 0.0.40
codegen_flags: <defaults>
</compile_context>

<pallas_src>
import functools

import jax
import jax.numpy as jnp
from jax.experimental import pallas as pl
from jax.experimental.pallas import tpu as pltpu


def _round_up(x, m):
    return -(-x // m) * m


def _dc_focal_kernel(x_ref, t_ref, stats_ref, focal_ref, *,
                     gamma, focal_smooth, s_valid, ts):
    s = pl.program_id(1)

    @pl.when(s == 0)
    def _():
        stats_ref[...] = jnp.zeros_like(stats_ref)
        focal_ref[...] = jnp.zeros_like(focal_ref)

    x = x_ref[...].astype(jnp.float32)         # (1, C, TS) probabilities
    t = t_ref[...]                             # (1, 1, TS) int32 labels
    _, C, TS = x.shape

    # Validity mask for the padded spatial tail (pad-value independent).
    pos = jax.lax.broadcasted_iota(jnp.int32, (1, 1, TS), 2) + s * ts
    valid = pos < s_valid                      # (1, 1, TS) bool
    t = jnp.where(valid, t, -1)

    # One-hot over the channel axis (scatter_(1, gt, 1) equivalent) via a
    # small (1, C, 1) iota broadcast -- no full (C, TS) iota materialization.
    ch = jax.lax.broadcasted_iota(jnp.int32, (1, C, 1), 1)
    y = (ch == t).astype(jnp.float32)          # (1, C, TS)
    xy = x * y                                 # reused by dice and focal

    # ---- SoftDice statistics: reduce over the spatial (lane) axis --------
    tp = jnp.sum(xy, axis=2)                   # (1, C)
    sx = jnp.sum(x, axis=2)                    # (1, C)
    sy = jnp.sum(y, axis=2)                    # (1, C)
    fp = sx - tp
    fn = sy - tp
    stats_ref[...] += jnp.concatenate(
        [tp[:, None, :], fp[:, None, :], fn[:, None, :]], axis=1)   # (1, 3, C)

    # ---- Focal loss (alpha=None -> unit weights), per-pixel then reduce ---
    lo = focal_smooth / max(C - 1, 1)          # guard C == 1 (degenerate case)
    hi = 1.0 - focal_smooth
    sxc = jnp.sum(x, axis=1)                   # (1, TS)  sum over channels
    sxyc = jnp.sum(xy, axis=1)                 # (1, TS)  prob of the gt class
    pt = lo * sxc + (hi - lo) * sxyc + focal_smooth
    logpt = jnp.log(pt)
    u = 1.0 - pt
    if gamma == 2.0:                           # default: square, no pow/EUP
        w = u * u
    elif gamma == float(int(gamma)) and 0 < int(gamma) <= 4:
        w = u
        for _ in range(int(gamma) - 1):
            w = w * u
    else:
        w = u ** gamma
    loss_pix = jnp.where(valid[:, 0, :], -w * logpt, 0.0)   # (1, TS)
    focal_ref[...] += jnp.sum(loss_pix)


def dc_and_focal_loss(net_output, target, *,
                      batch_dice=False, do_bg=True, dice_smooth=1.0,
                      gamma=2.0, focal_smooth=1e-5):
    """net_output: (B, C, H, W) float probabilities (apply_nonlin=None),
       target:     (B, 1, H, W) integer label map."""
    # TODO(synk): alpha != None and loss_mask are not supported (defaults used).
    B, C, H, W = net_output.shape
    S = H * W

    x = net_output.reshape(B, C, S)
    if x.dtype not in (jnp.float32, jnp.bfloat16, jnp.float16):
        x = x.astype(jnp.float32)              # bf16/f16 inputs pass through
    # TODO(synk): int8 labels would cut label DMA 4x; kept int32 for safe lowering.
    t = target.reshape(B, 1, S).astype(jnp.int32)

    # Spatial tile: multiple of 128 lanes, bounded so the f32 x block stays
    # ~<= 4 MiB per buffer (8 MiB double-buffered) -> fits v5e 16 MiB and
    # v6e/v7x 32 MiB default scoped VMEM with room for labels/outputs.
    ts_cap = max(128, ((4 << 20) // (4 * C)) // 128 * 128)
    TS = min(8192, ts_cap, _round_up(S, 128))
    S_pad = _round_up(S, TS)
    n_s = S_pad // TS
    if S_pad != S:
        x = jnp.pad(x, ((0, 0), (0, 0), (0, S_pad - S)))
        t = jnp.pad(t, ((0, 0), (0, 0), (0, S_pad - S)), constant_values=-1)

    kernel = functools.partial(_dc_focal_kernel,
                               gamma=float(gamma),
                               focal_smooth=float(focal_smooth),
                               s_valid=S, ts=TS)

    stats, focal_part = pl.pallas_call(
        kernel,
        out_shape=(
            jax.ShapeDtypeStruct((B, 3, C), jnp.float32),   # fused tp/fp/fn
            jax.ShapeDtypeStruct((B, 1, 1), jnp.float32),   # per-batch focal
        ),
        grid_spec=pltpu.PrefetchScalarGridSpec(
            num_scalar_prefetch=0,
            grid=(B, n_s),
            in_specs=[
                pl.BlockSpec((1, C, TS), lambda b, s: (b, 0, s)),
                pl.BlockSpec((1, 1, TS), lambda b, s: (b, 0, s)),
            ],
            out_specs=[
                pl.BlockSpec((1, 3, C), lambda b, s: (b, 0, 0)),
                pl.BlockSpec((1, 1, 1), lambda b, s: (b, 0, 0)),
            ],
        ),
        compiler_params=pltpu.CompilerParams(
            dimension_semantics=("parallel", "arbitrary"),
            vmem_limit_bytes=32 * 1024 * 1024),
    )(x, t)

    tp = stats[:, 0, :]
    fp = stats[:, 1, :]
    fn = stats[:, 2, :]

    # ---- SoftDice finish (tiny glue on (B, C) stats) ----------------------
    if batch_dice:
        tp = tp.sum(0); fp = fp.sum(0); fn = fn.sum(0)
    nominator = 2.0 * tp + dice_smooth
    denominator = 2.0 * tp + fp + fn + dice_smooth
    dc = nominator / (denominator + 1e-8)
    if not do_bg:
        dc = dc[1:] if batch_dice else dc[:, 1:]
    dc_loss = -jnp.mean(dc)

    # ---- Focal finish (size_average=True over all B*S pixels) -------------
    focal_loss = jnp.sum(focal_part) / float(B * S)

    return dc_loss + focal_loss


def _reference(net_output, target, *, dice_smooth=1.0, gamma=2.0,
               focal_smooth=1e-5):
    """Pure-JAX reference mirroring the PyTorch forward (defaults)."""
    B, C, H, W = net_output.shape
    x = net_output.astype(jnp.float32)
    y = jax.nn.one_hot(target[:, 0], C, axis=1, dtype=jnp.float32)  # (B,C,H,W)
    tp = (x * y).sum((2, 3))
    fp = (x * (1.0 - y)).sum((2, 3))
    fn = ((1.0 - x) * y).sum((2, 3))
    dc = (2.0 * tp + dice_smooth) / (2.0 * tp + fp + fn + dice_smooth + 1e-8)
    dc_loss = -dc.mean()
    oh = jnp.clip(y, focal_smooth / (C - 1), 1.0 - focal_smooth)
    pt = (oh * x).sum(1) + focal_smooth
    logpt = jnp.log(pt)
    focal = (-((1.0 - pt) ** gamma) * logpt).mean()
    return dc_loss + focal


if __name__ == "__main__":
    key = jax.random.PRNGKey(0)
    k1, k2 = jax.random.split(key)
    B, C, H, W = 2, 4, 16, 16

    # Module is used with apply_nonlin=None, i.e. it expects probabilities.
    logits = jax.random.normal(k1, (B, C, H, W), dtype=jnp.float32)
    net_output = jax.nn.softmax(logits, axis=1)
    target = jax.random.randint(k2, (B, 1, H, W), 0, C, dtype=jnp.int32)

    loss = dc_and_focal_loss(net_output, target)
    loss = jax.block_until_ready(loss)

    ref = _reference(net_output, target)
    assert jnp.allclose(loss, ref, rtol=1e-5, atol=1e-5), (loss, ref)

    print("KERNEL_OK")
</pallas_src>

<mosaic_0001>
module attributes {stable_mosaic.version = 11 : i64} {
  func.func @_dc_focal_kernel(%arg0: i32, %arg1: i32, %arg2: memref<1x4x256xf32, #tpu.memory_space<vmem>>, %arg3: memref<1x1x256xi32, #tpu.memory_space<vmem>>, %arg4: memref<1x3x4xf32, #tpu.memory_space<vmem>>, %arg5: memref<1x1x1xf32, #tpu.memory_space<vmem>>) attributes {dimension_semantics = [#tpu.dimension_semantics<parallel>, #tpu.dimension_semantics<arbitrary>], iteration_bounds = array<i64: 2, 1>, scalar_prefetch = 0 : i64, scratch_operands = 0 : i64, tpu.core_type = #tpu.core_type<tc>, window_params = [{transform_indices = @transform_0, window_bounds = array<i64: 1, 4, 256>}, {transform_indices = @transform_1, window_bounds = array<i64: 1, 1, 256>}, {transform_indices = @transform_2, window_bounds = array<i64: 1, 3, 4>}, {transform_indices = @transform_3, window_bounds = array<i64: 1, 1, 1>}]} {
    %c0_i32 = arith.constant 0 : i32
    %0 = arith.cmpi eq, %arg1, %c0_i32 : i32
    %1 = arith.extui %0 : i1 to i32
    %c0_i32_0 = arith.constant 0 : i32
    %2 = arith.cmpi ne, %1, %c0_i32_0 : i32
    scf.if %2 {
      %cst_30 = arith.constant 0.000000e+00 : f32
      %59 = vector.broadcast %cst_30 : f32 to vector<1x3x4xf32>
      %c0_31 = arith.constant 0 : index
      %c0_32 = arith.constant 0 : index
      %c0_33 = arith.constant 0 : index
      %60 = vector.load %arg4[%c0_31, %c0_32, %c0_33] : memref<1x3x4xf32, #tpu.memory_space<vmem>>, vector<1x3x4xf32>
      tpu.vector_store %arg4[%c0_31, %c0_32, %c0_33], %59 {strides = array<i32>} : memref<1x3x4xf32, #tpu.memory_space<vmem>>, vector<1x3x4xf32>,
      %cst_34 = arith.constant 0.000000e+00 : f32
      %61 = vector.broadcast %cst_34 : f32 to vector<1x1x1xf32>
      %c0_35 = arith.constant 0 : index
      %c0_36 = arith.constant 0 : index
      %c0_37 = arith.constant 0 : index
      %62 = vector.load %arg5[%c0_35, %c0_36, %c0_37] : memref<1x1x1xf32, #tpu.memory_space<vmem>>, vector<1x1x1xf32>
      tpu.vector_store %arg5[%c0_35, %c0_36, %c0_37], %61 {strides = array<i32>} : memref<1x1x1xf32, #tpu.memory_space<vmem>>, vector<1x1x1xf32>,
    } else {
    }
    %c0 = arith.constant 0 : index
    %c0_1 = arith.constant 0 : index
    %c0_2 = arith.constant 0 : index
    %3 = vector.load %arg2[%c0, %c0_1, %c0_2] : memref<1x4x256xf32, #tpu.memory_space<vmem>>, vector<1x4x256xf32>
    %c0_3 = arith.constant 0 : index
    %c0_4 = arith.constant 0 : index
    %c0_5 = arith.constant 0 : index
    %4 = vector.load %arg3[%c0_3, %c0_4, %c0_5] : memref<1x1x256xi32, #tpu.memory_space<vmem>>, vector<1x1x256xi32>
    %5 = tpu.iota {dimensions = array<i32: 2>} : vector<1x1x256xi32>
    %c256_i32 = arith.constant 256 : i32
    %6 = arith.muli %arg1, %c256_i32 : i32
    %7 = vector.broadcast %6 : i32 to vector<1x1x256xi32>
    %8 = arith.addi %5, %7 : vector<1x1x256xi32>
    %c256_i32_6 = arith.constant 256 : i32
    %9 = vector.broadcast %c256_i32_6 : i32 to vector<1x1x256xi32>
    %10 = arith.cmpi slt, %8, %9 : vector<1x1x256xi32>
    %c-1_i32 = arith.constant -1 : i32
    %11 = vector.broadcast %c-1_i32 : i32 to vector<1x1x256xi32>
    %12 = arith.select %10, %4, %11 : vector<1x1x256xi1>, vector<1x1x256xi32>
    %13 = tpu.iota {dimensions = array<i32: 1>} : vector<1x4x1xi32>
    %14 = vector.broadcast %13 : vector<1x4x1xi32> to vector<1x4x256xi32>
    %15 = vector.broadcast %12 : vector<1x1x256xi32> to vector<1x4x256xi32>
    %16 = arith.cmpi eq, %14, %15 : vector<1x4x256xi32>
    %17 = arith.extui %16 : vector<1x4x256xi1> to vector<1x4x256xi32>
    %18 = arith.sitofp %17 : vector<1x4x256xi32> to vector<1x4x256xf32>
    %19 = arith.mulf %3, %18 : vector<1x4x256xf32>
    %cst = arith.constant dense<0.000000e+00> : vector<1x4xf32>
    %20 = vector.multi_reduction <add>, %19, %cst [2] : vector<1x4x256xf32> to vector<1x4xf32>
    %cst_7 = arith.constant dense<0.000000e+00> : vector<1x4xf32>
    %21 = vector.multi_reduction <add>, %3, %cst_7 [2] : vector<1x4x256xf32> to vector<1x4xf32>
    %cst_8 = arith.constant dense<0.000000e+00> : vector<1x4xf32>
    %22 = vector.multi_reduction <add>, %18, %cst_8 [2] : vector<1x4x256xf32> to vector<1x4xf32>
    %23 = arith.subf %21, %20 : vector<1x4xf32>
    %24 = arith.subf %22, %20 : vector<1x4xf32>
    %c0_9 = arith.constant 0 : index
    %c0_10 = arith.constant 0 : index
    %c0_11 = arith.constant 0 : index
    %25 = vector.load %arg4[%c0_9, %c0_10, %c0_11] : memref<1x3x4xf32, #tpu.memory_space<vmem>>, vector<1x3x4xf32>
    %26 = vector.shape_cast %20 : vector<1x4xf32> to vector<1x1x4xf32>
    %27 = vector.shape_cast %23 : vector<1x4xf32> to vector<1x1x4xf32>
    %28 = vector.shape_cast %24 : vector<1x4xf32> to vector<1x1x4xf32>
    %29 = tpu.concatenate %26, %27, %28 in 1 : vector<1x1x4xf32>, vector<1x1x4xf32>, vector<1x1x4xf32> -> vector<1x3x4xf32>
    %30 = arith.addf %25, %29 : vector<1x3x4xf32>
    %c0_12 = arith.constant 0 : index
    %c0_13 = arith.constant 0 : index
    %c0_14 = arith.constant 0 : index
    %31 = vector.load %arg4[%c0_12, %c0_13, %c0_14] : memref<1x3x4xf32, #tpu.memory_space<vmem>>, vector<1x3x4xf32>
    tpu.vector_store %arg4[%c0_12, %c0_13, %c0_14], %30 {strides = array<i32>} : memref<1x3x4xf32, #tpu.memory_space<vmem>>, vector<1x3x4xf32>,
    %cst_15 = arith.constant dense<0.000000e+00> : vector<1x256xf32>
    %32 = vector.multi_reduction <add>, %3, %cst_15 [1] : vector<1x4x256xf32> to vector<1x256xf32>
    %cst_16 = arith.constant dense<0.000000e+00> : vector<1x256xf32>
    %33 = vector.multi_reduction <add>, %19, %cst_16 [1] : vector<1x4x256xf32> to vector<1x256xf32>
    %cst_17 = arith.constant 3.33333332E-6 : f32
    %34 = vector.broadcast %cst_17 : f32 to vector<1x256xf32>
    %35 = arith.mulf %34, %32 : vector<1x256xf32>
    %cst_18 = arith.constant 0.999986648 : f32
    %36 = vector.broadcast %cst_18 : f32 to vector<1x256xf32>
    %37 = arith.mulf %36, %33 : vector<1x256xf32>
    %38 = arith.addf %35, %37 : vector<1x256xf32>
    %cst_19 = arith.constant 9.99999974E-6 : f32
    %39 = vector.broadcast %cst_19 : f32 to vector<1x256xf32>
    %40 = arith.addf %38, %39 : vector<1x256xf32>
    %41 = math.log %40 : vector<1x256xf32>
    %cst_20 = arith.constant 1.000000e+00 : f32
    %42 = vector.broadcast %cst_20 : f32 to vector<1x256xf32>
    %43 = arith.subf %42, %40 : vector<1x256xf32>
    %44 = arith.mulf %43, %43 : vector<1x256xf32>
    %45 = vector.shape_cast %10 : vector<1x1x256xi1> to vector<1x256xi1>
    %cst_21 = arith.constant 0.000000e+00 : f32
    %46 = vector.broadcast %cst_21 : f32 to vector<1x256xf32>
    %47 = arith.subf %46, %44 : vector<1x256xf32>
    %48 = arith.mulf %47, %41 : vector<1x256xf32>
    %cst_22 = arith.constant 0.000000e+00 : f32
    %49 = vector.broadcast %cst_22 : f32 to vector<1x256xf32>
    %50 = arith.select %45, %48, %49 : vector<1x256xi1>, vector<1x256xf32>
    %c0_23 = arith.constant 0 : index
    %c0_24 = arith.constant 0 : index
    %c0_25 = arith.constant 0 : index
    %51 = vector.load %arg5[%c0_23, %c0_24, %c0_25] : memref<1x1x1xf32, #tpu.memory_space<vmem>>, vector<1x1x1xf32>
    %52 = vector.shape_cast %50 : vector<1x256xf32> to vector<1x1x256xf32>
    %cst_26 = arith.constant dense<0.000000e+00> : vector<1xf32>
    %53 = vector.multi_reduction <add>, %52, %cst_26 [1, 2] : vector<1x1x256xf32> to vector<1xf32>
    %54 = vector.shape_cast %53 : vector<1xf32> to vector<1x1x1xf32>
    %55 = vector.extract %54[0, 0, 0] : f32 from vector<1x1x1xf32>
    %56 = vector.broadcast %55 : f32 to vector<1x1x1xf32>
    %57 = arith.addf %51, %56 : vector<1x1x1xf32>
    %c0_27 = arith.constant 0 : index
    %c0_28 = arith.constant 0 : index
    %c0_29 = arith.constant 0 : index
    %58 = vector.load %arg5[%c0_27, %c0_28, %c0_29] : memref<1x1x1xf32, #tpu.memory_space<vmem>>, vector<1x1x1xf32>
    tpu.vector_store %arg5[%c0_27, %c0_28, %c0_29], %57 {strides = array<i32>} : memref<1x1x1xf32, #tpu.memory_space<vmem>>, vector<1x1x1xf32>,
    return
  }
  func.func @transform_0(%arg0: i32, %arg1: i32) -> (i32, i32, i32) {
    %c0_i32 = arith.constant 0 : i32
    %c0_i32_0 = arith.constant 0 : i32
    return %arg0, %c0_i32, %arg1 : i32, i32, i32
  }
  func.func @transform_1(%arg0: i32, %arg1: i32) -> (i32, i32, i32) {
    %c0_i32 = arith.constant 0 : i32
    %c0_i32_0 = arith.constant 0 : i32
    return %arg0, %c0_i32, %arg1 : i32, i32, i32
  }
  func.func @transform_2(%arg0: i32, %arg1: i32) -> (i32, i32, i32) {
    %c0_i32 = arith.constant 0 : i32
    %c0_i32_0 = arith.constant 0 : i32
    %c0_i32_1 = arith.constant 0 : i32
    return %arg0, %c0_i32, %c0_i32_0 : i32, i32, i32
  }
  func.func @transform_3(%arg0: i32, %arg1: i32) -> (i32, i32, i32) {
    %c0_i32 = arith.constant 0 : i32
    %c0_i32_0 = arith.constant 0 : i32
    %c0_i32_1 = arith.constant 0 : i32
    return %arg0, %c0_i32, %c0_i32_0 : i32, i32, i32
  }
}

</mosaic_0001>

<llo_original>
// kernel: tpu_custom_call.1
$region0: #{tpu_custom_call.1}
  #allocation0 [shape = 'u32[]', space=smem, size = 0x4, offset = 0x4, fixed_abs, tag = 'smem constant byte address 0x4 - core index']
  #allocation1 [shape = 'u32[144,128]{1,0:T(1,128)}', space=vmem, size = 0x12000, scoped, tag = 'internal scratch']
  %s0 = inlined_call_operand.hbm [shape: f32[2,4,256], index: 0, kind: input, shape index: {}]
  %s1 = inlined_call_operand.hbm [shape: s32[2,1,256], index: 1, kind: input, shape index: {}]
  %s2 = inlined_call_operand.vmem [shape: f32[2,3,4], index: 2, kind: output, shape index: {0}]
  %s3 = inlined_call_operand.vmem [shape: f32[2,1,1], index: 3, kind: output, shape index: {1}]
  %4 = xla_tuple %s2, %s3
  %s5 = sld [smem:[#allocation0]]
  $region61: #{tpu_custom_call.1} parent=0
    _
  %s7 = ssub.s32 1, %s5
  %s8 = scalar_select 0, %s7, %s5
  $region1: #{tpu_custom_call.1} parent=0
    #allocation2 [shape = 'u8[8192]{0}', space=vmem, size = 0x2000, scoped, tag = 'input window, operand 0']
    #allocation3 [shape = 's32[2]{0}', space=sflag, size = 0x8, scoped, tag = 'scoped memory for tpu_custom_call.1']
    #allocation4 [shape = 'u8[2048]{0}', space=vmem, size = 0x800, scoped, tag = 'input window, operand 1']
    #allocation5 [shape = 's32[2]{0}', space=sflag, size = 0x8, scoped, tag = 'scoped memory for tpu_custom_call.1']
    %9 = vsyncpa [#allocation3], 0
    %s10 = scalar_lea.sflag [#allocation3], 1
    %11 = vsyncpa %s10, 0
    %12 = vsyncpa [#allocation5], 0
    %s13 = scalar_lea.sflag [#allocation5], 1
    %14 = vsyncpa %s13, 0
    loop: start=0, step=1, limit=4
    $region2: #{tpu_custom_call.1} parent=1 // loop_pre_header
      _
    $region3: #{tpu_custom_call.1} parent=1 // loop_header
      %s16 = sphi 0, %s20
      %p17 = scmp.ge.s32.totalorder %s16, 4
      %s23 = sphi 0, %s35
      %s24 = sphi 0, %s31
      %s25 = sphi 0, %s23
      %s26 = sphi 0, %s24
      %s27 = sphi 0, %s25
      %s28 = sphi 0, %s26
      %s40 = sphi 0, %s42
      %s43 = sphi 0, %s40
      %s44 = sphi 0, %s43
      %s60 = sphi 0, %s44
      %s68 = sphi 0, %s70
      %s71 = sphi 0, %s68
      %s72 = sphi 0, %s71
      %s88 = sphi 0, %s72
      %s94 = sphi 0, %s96
      %s97 = sphi 0, %s94
      %s98 = sphi 0, %s97
      %s114 = sphi 0, %s98
      %s120 = sphi 0, %s122
      %s123 = sphi 0, %s120
      %s124 = sphi 0, %s123
      %s140 = sphi 0, %s124
    $region4: #{tpu_custom_call.1} parent=1 // loop_header_branch
      %19 = sbr.rel (%p17) target = $region8
    $region5: #{tpu_custom_call.1} parent=1 // loop_body
      %s21 = ssub.s32 %s16, 1
      %s22 = ssub.s32 %s16, 2
      %s29 = sadd.s32 1, %s24
      %p30 = scmp.ge.s32.totalorder %s29, 1
      %s31 = scalar_select %p30, 0, %s29
      %s32 = sadd.s32 1, %s23
      %s33 = scalar_select %p30, %s32, %s23
      %p34 = scmp.ge.s32.totalorder %s33, 2
      %s35 = scalar_select %p34, 0, %s33
      %s36 = ssub.s32 %s23, %s35
      %s37 = ssub.s32 %s24, %s31
      %s38 = sor.u32 %s36, %s37
      %p39 = scmp.eq.s32.totalorder %s38, 0
      %s41 = sadd.s32 %s40, 1
      %s42 = scalar_select %p39, %s40, %s41
      %p45 = pneg %p39
      %p46 = scmp.eq.s32.totalorder %s16, 1
      %p47 = por %p45, %p46
      %p48 = scmp.ne.s32.totalorder %s40, %s43
      %p49 = scmp.eq.s32.totalorder %s16, 0
      %p50 = por %p48, %p49
      %p51 = scmp.ne.s32.totalorder %s40, %s43
      %p52 = scmp.eq.s32.totalorder %s21, 1
      %p53 = por %p51, %p52
      %p54 = scmp.ne.s32.totalorder %s43, %s44
      %p55 = scmp.eq.s32.totalorder %s21, 0
      %p56 = por %p54, %p55
      %p57 = scmp.ne.s32.totalorder %s43, %s44
      %p58 = scmp.eq.s32.totalorder %s22, 1
      %p59 = por %p57, %p58
      %p61 = scmp.ne.s32.totalorder %s44, %s60
      %p62 = scmp.eq.s32.totalorder %s22, 0
      %p63 = por %p61, %p62
      %s64 = ssub.s32 %s23, %s35
      %s65 = ssub.s32 %s24, %s31
      %s66 = sor.u32 %s64, %s65
      %p67 = scmp.eq.s32.totalorder %s66, 0
      %s69 = sadd.s32 %s68, 1
      %s70 = scalar_select %p67, %s68, %s69
      %p73 = pneg %p67
      %p74 = scmp.eq.s32.totalorder %s16, 1
      %p75 = por %p73, %p74
      %p76 = scmp.ne.s32.totalorder %s68, %s71
      %p77 = scmp.eq.s32.totalorder %s16, 0
      %p78 = por %p76, %p77
      %p79 = scmp.ne.s32.totalorder %s68, %s71
      %p80 = scmp.eq.s32.totalorder %s21, 1
      %p81 = por %p79, %p80
      %p82 = scmp.ne.s32.totalorder %s71, %s72
      %p83 = scmp.eq.s32.totalorder %s21, 0
      %p84 = por %p82, %p83
      %p85 = scmp.ne.s32.totalorder %s71, %s72
      %p86 = scmp.eq.s32.totalorder %s22, 1
      %p87 = por %p85, %p86
      %p89 = scmp.ne.s32.totalorder %s72, %s88
      %p90 = scmp.eq.s32.totalorder %s22, 0
      %p91 = por %p89, %p90
      %s92 = ssub.s32 %s23, %s35
      %p93 = scmp.eq.s32.totalorder %s92, 0
      %s95 = sadd.s32 %s94, 1
      %s96 = scalar_select %p93, %s94, %s95
      %p99 = pneg %p93
      %p100 = scmp.eq.s32.totalorder %s16, 1
      %p101 = por %p99, %p100
      %p102 = scmp.ne.s32.totalorder %s94, %s97
      %p103 = scmp.eq.s32.totalorder %s16, 0
      %p104 = por %p102, %p103
      %p105 = scmp.ne.s32.totalorder %s94, %s97
      %p106 = scmp.eq.s32.totalorder %s21, 1
      %p107 = por %p105, %p106
      %p108 = scmp.ne.s32.totalorder %s97, %s98
      %p109 = scmp.eq.s32.totalorder %s21, 0
      %p110 = por %p108, %p109
      %p111 = scmp.ne.s32.totalorder %s97, %s98
      %p112 = scmp.eq.s32.totalorder %s22, 1
      %p113 = por %p111, %p112
      %p115 = scmp.ne.s32.totalorder %s98, %s114
      %p116 = scmp.eq.s32.totalorder %s22, 0
      %p117 = por %p115, %p116
      %s118 = ssub.s32 %s23, %s35
      %p119 = scmp.eq.s32.totalorder %s118, 0
      %s121 = sadd.s32 %s120, 1
      %s122 = scalar_select %p119, %s120, %s121
      %p125 = pneg %p119
      %p126 = scmp.eq.s32.totalorder %s16, 1
      %p127 = por %p125, %p126
      %p128 = scmp.ne.s32.totalorder %s120, %s123
      %p129 = scmp.eq.s32.totalorder %s16, 0
      %p130 = por %p128, %p129
      %p131 = scmp.ne.s32.totalorder %s120, %s123
      %p132 = scmp.eq.s32.totalorder %s21, 1
      %p133 = por %p131, %p132
      %p134 = scmp.ne.s32.totalorder %s123, %s124
      %p135 = scmp.eq.s32.totalorder %s21, 0
      %p136 = por %p134, %p135
      %p137 = scmp.ne.s32.totalorder %s123, %s124
      %p138 = scmp.eq.s32.totalorder %s22, 1
      %p139 = por %p137, %p138
      %p141 = scmp.ne.s32.totalorder %s124, %s140
      %p142 = scmp.eq.s32.totalorder %s22, 0
      %p143 = por %p141, %p142
      %p144 = scmp.le.s32.totalorder 1, %s16
      %p145 = scmp.lt.s32.totalorder %s16, 3
      %p146 = pnand %p144, %p145
      %p147 = pneg %p146
      // Predicated region
      $region9: #{tpu_custom_call.1} parent=5 // pred_check
        _
      $region10: #{tpu_custom_call.1} parent=5 // pred_check_branch
        %149 = sbr.rel (%p146) target = $region12
      $region11: #{tpu_custom_call.1} parent=5 // pred_region
        %s150 = ssub.s32 %s16, 1
      $region12: #{tpu_custom_call.1} parent=5 // pred_fallthru
        _
      %p151 = scmp.lt.s32.totalorder %s16, 2
      // Predicated region
      $region13: #{tpu_custom_call.1} parent=5 // pred_check
        %p152 = pneg %p151
      $region14: #{tpu_custom_call.1} parent=5 // pred_check_branch
        %154 = sbr.rel (%p152) target = $region16
      $region15: #{tpu_custom_call.1} parent=5 // pred_region
        // Predicated region
        $region17: #{tpu_custom_call.1} parent=15 // pred_check
          %p155 = pneg %p50
        $region18: #{tpu_custom_call.1} parent=15 // pred_check_branch
          %157 = sbr.rel (%p155) target = $region20
        $region19: #{tpu_custom_call.1} parent=15 // pred_region
          %s158 = sand.u32 %s40, 1
          %s159 = scalar_lea.sflag [#allocation3], %s158
          %s160 = sand.u32 %s40, 1
          %s161 = smul.addr %s160, 8
          %s162 = scalar_lea.vmem [#allocation2], %s161
          %s163 = smul.u32 2, %s24
          %s165 = ssub.s32 128, 128
          %166 = vsyncadd %s159, %s165
          %s167 = smul.addr %s23, 2
          %s168 = sadd.s32 %s163, %s167
          %s169 = smul.addr %s168, 64
          %s170 = scalar_lea.hbm %s0, %s169
          %s172 = sshll.u32 %s162, 4
          %s173 = int_to_ptr.vmem [resolvable:$true] %s172
          %175 = dma.hbm_to_vmem [thread:$0]  %s170, 128, %s173, %s159
        $region20: #{tpu_custom_call.1} parent=15 // pred_fallthru
          _
        // Predicated region
        $region21: #{tpu_custom_call.1} parent=15 // pred_check
          %p176 = pneg %p78
        $region22: #{tpu_custom_call.1} parent=15 // pred_check_branch
          %178 = sbr.rel (%p176) target = $region24
        $region23: #{tpu_custom_call.1} parent=15 // pred_region
          %s179 = sand.u32 %s68, 1
          %s180 = scalar_lea.sflag [#allocation5], %s179
          %s181 = sand.u32 %s68, 1
          %s182 = smul.addr %s181, 2
          %s183 = scalar_lea.vmem [#allocation4], %s182
          %s184 = smul.u32 2, %s24
          %s186 = ssub.s32 32, 32
          %187 = vsyncadd %s180, %s186
          %s188 = smul.addr %s23, 2
          %s189 = sadd.s32 %s184, %s188
          %s190 = smul.addr %s189, 16
          %s191 = scalar_lea.hbm %s1, %s190
          %s193 = sshll.u32 %s183, 4
          %s194 = int_to_ptr.vmem [resolvable:$true] %s193
          %196 = dma.hbm_to_vmem [thread:$0]  %s191, 32, %s194, %s180
        $region24: #{tpu_custom_call.1} parent=15 // pred_fallthru
          _
      $region16: #{tpu_custom_call.1} parent=5 // pred_fallthru
        _
      %p197 = scmp.le.s32.totalorder 1, %s16
      %p198 = scmp.lt.s32.totalorder %s16, 3
      %p199 = pnand %p197, %p198
      %p200 = pneg %p199
      // Predicated region
      $region25: #{tpu_custom_call.1} parent=5 // pred_check
        _
      $region26: #{tpu_custom_call.1} parent=5 // pred_check_branch
        %202 = sbr.rel (%p199) target = $region28
      $region27: #{tpu_custom_call.1} parent=5 // pred_region
        %s203 = ssub.s32 %s16, 1
        %s204 = sand.u32 %s43, 1
        %s205 = scalar_lea.sflag [#allocation3], %s204
        %s206 = sand.u32 %s43, 1
        %s207 = smul.addr %s206, 8
        %s208 = scalar_lea.vmem [#allocation2], %s207
        // Predicated region
        $region29: #{tpu_custom_call.1} parent=27 // pred_check
          %p209 = pneg %p56
        $region30: #{tpu_custom_call.1} parent=27 // pred_check_branch
          %211 = sbr.rel (%p209) target = $region32
        $region31: #{tpu_custom_call.1} parent=27 // pred_region
          %212 = dma.done %s205, 128
        $region32: #{tpu_custom_call.1} parent=27 // pred_fallthru
          _
        %s213 = sand.u32 %s71, 1
        %s214 = scalar_lea.sflag [#allocation5], %s213
        %s215 = sand.u32 %s71, 1
        %s216 = smul.addr %s215, 2
        %s217 = scalar_lea.vmem [#allocation4], %s216
        // Predicated region
        $region33: #{tpu_custom_call.1} parent=27 // pred_check
          %p218 = pneg %p84
        $region34: #{tpu_custom_call.1} parent=27 // pred_check_branch
          %220 = sbr.rel (%p218) target = $region36
        $region35: #{tpu_custom_call.1} parent=27 // pred_region
          %221 = dma.done %s214, 32
        $region36: #{tpu_custom_call.1} parent=27 // pred_fallthru
          _
        %s222 = sand.u32 %s43, 1
        %s223 = scalar_lea.sflag [#allocation3], %s222
        %s224 = sand.u32 %s43, 1
        %s225 = smul.addr %s224, 8
        %s226 = scalar_lea.vmem [#allocation2], %s225
        %p227 = pneg %p56
        %p228 = pneg %p53
        %s229 = sand.u32 %s71, 1
        %s230 = scalar_lea.sflag [#allocation5], %s229
        %s231 = sand.u32 %s71, 1
        %s232 = smul.addr %s231, 2
        %s233 = scalar_lea.vmem [#allocation4], %s232
        %p234 = pneg %p84
        %p235 = pneg %p81
        %p236 = pneg %p110
        %p237 = pneg %p107
        %p238 = scmp.lt.s32.totalorder %s25, 1
        %s239 = scalar_select %p238, %s25, 1
        %s240 = smul.addr %s239, 4
        %s241 = scalar_lea.vmem %s2, %s240
        %p242 = pneg %p136
        %p243 = pneg %p133
        %p244 = scmp.lt.s32.totalorder %s25, 1
        %s245 = scalar_select %p244, %s25, 1
        %s246 = scalar_lea.vmem %s3, %s245
        %s247 = smul.u32 2, %s26
        %s248 = smul.u32 2, %s26
        %p249 = scmp.lt.s32.totalorder %s25, 1
        %s250 = scalar_select %p249, %s25, 1
        %s251 = smul.addr %s250, 4
        %s252 = scalar_lea.vmem %s2, %s251
        %p253 = scmp.lt.s32.totalorder %s25, 1
        %s254 = scalar_select %p253, %s25, 1
        %s255 = scalar_lea.vmem %s3, %s254
        %p256 = scmp.eq.s32.totalorder %s26, 0
        // Predicated region
        $region37: #{tpu_custom_call.1} parent=27 // pred_check
          %p257 = pneg %p256
        $region38: #{tpu_custom_call.1} parent=27 // pred_check_branch
          %259 = sbr.rel (%p257) target = $region40
        $region39: #{tpu_custom_call.1} parent=27 // pred_region
          %vm260 = vcmask 26624
          %261 = vst.msk [vmem:[%s252] sm:$0x7] %vm260, 0.0
          %vm262 = vcmask 0
          %263 = vst.msk [vmem:[%s255] sm:$0x1] %vm262, 0.0
        $region40: #{tpu_custom_call.1} parent=27 // pred_fallthru
          _
        %v264 = vld [vmem:[%s208] sm:$0xff]
        %v265 = vld [vmem:[%s217] sm:$0x3]
        %v266 = vlaneseq
        %v267 = vand.u32 %v266, 127
        %v268 = vadd.s32 %v267, 128
        %s269 = smul.u32 %s26, 256
        %v270 = vstv %s269
        %v271 = vadd.s32 %v267, %v270
        %v272 = vadd.s32 %v268, %v270
        %vm273 = vcmp.lt.s32.totalorder %v271, 256
        %vm274 = vcmp.lt.s32.totalorder %v272, 256
        %v275 = vlaneseq
        %v276 = vshrl.u32 %v275, 7
        %v277 = vsub.s32 0, %v276
        %v278 = vrot.slane %v265, %v277
        %v279 = vlaneseq
        %v280 = vshrl.u32 %v279, 7
        %v281 = vsub.s32 1, %v280
        %v282 = vrot.slane %v265, %v281
        %v283 = vsel %vm273, %v278, 4294967295
        %v284 = vsel %vm274, %v282, 4294967295
        %v285 = vlaneseq
        %v286 = vshrl.u32 %v285, 7
        %v287 = vlaneseq
        %v288 = vshrl.u32 %v287, 7
        %v289 = vsub.s32 0, %v288
        %v290 = vrot.slane %v283, %v289
        %v291 = vlaneseq
        %v292 = vshrl.u32 %v291, 7
        %v293 = vsub.s32 0, %v292
        %v294 = vrot.slane %v284, %v293
        %vm295 = vcmp.eq.s32.totalorder %v286, %v290
        %vm296 = vcmp.eq.s32.totalorder %v286, %v294
        %v297 = vsel %vm295, 1, 0
        %v298 = vsel %vm296, 1, 0
        %v299 = vcvt.s32.f32 %v297
        %v300 = vcvt.s32.f32 %v298
        %v303 = vcombine.low %v299, %v300
        %v305 = vmul.f32 %v264, %v303
        %v307 = vcombine.high %v305, %v305
        %vm309 = vcmask 1043456
        %v310 = vsel %vm309, %v305, 0.0
        %v311 = vsel %vm309, %v307, 0.0
        %v312 = vadd.f32 %v310, %v311
        %313 = vadd.xlane.f32.xlu0 %v312
        %v314 = vpop.xlane.xlu0 %313
        %v316 = vcombine.high %v264, %v264
        %v318 = vsel %vm309, %v264, 0.0
        %v319 = vsel %vm309, %v316, 0.0
        %v320 = vadd.f32 %v318, %v319
        %321 = vadd.xlane.f32.xlu0 %v320
        %v322 = vpop.xlane.xlu0 %321
        %v323 = vsel %vm309, %v299, 0.0
        %v324 = vsel %vm309, %v300, 0.0
        %v325 = vadd.f32 %v323, %v324
        %326 = vadd.xlane.f32.xlu0 %v325
        %v327 = vpop.xlane.xlu0 %326
        %v328 = vsub.f32 %v322, %v314
        %v329 = vsub.f32 %v327, %v314
        %v330 = vld [vmem:[%s252] sm:$0x7]
        %v332 = vlaneseq
        %v333 = vshrl.u32 %v332, 7
        %v334 = vsub.s32 %v267, %v333
        %v335 = vrot.slane %v314, %v334
        %v338 = vlaneseq
        %v339 = vshrl.u32 %v338, 7
        %v340 = vsub.s32 %v267, %v339
        %v341 = vrot.slane %v328, %v340
        %v344 = vlaneseq
        %v345 = vshrl.u32 %v344, 7
        %v346 = vsub.s32 %v267, %v345
        %v347 = vrot.slane %v329, %v346
        %vm349 = vcmask 1040384
        %v350 = vsel %vm349, %v335, %v341
        %vm351 = vcmask 1041408
        %v352 = vsel %vm351, %v350, %v347
        %v353 = vadd.f32 %v330, %v352
        %vm354 = vcmask 26624
        %355 = vst.msk [vmem:[%s252] sm:$0x7] %vm354, %v353
        %v356 = vrot.slane %v318, 4
        %v357 = vadd.f32 %v318, %v356
        %v358 = vrot.slane %v357, 2
        %v359 = vadd.f32 %v357, %v358
        %v360 = vrot.slane %v359, 1
        %v361 = vadd.f32 %v359, %v360
        %v362 = vrot.slane %v319, 4
        %v363 = vadd.f32 %v319, %v362
        %v364 = vrot.slane %v363, 2
        %v365 = vadd.f32 %v363, %v364
        %v366 = vrot.slane %v365, 1
        %v367 = vadd.f32 %v365, %v366
        %v368 = vrot.slane %v310, 4
        %v369 = vadd.f32 %v310, %v368
        %v370 = vrot.slane %v369, 2
        %v371 = vadd.f32 %v369, %v370
        %v372 = vrot.slane %v371, 1
        %v373 = vadd.f32 %v371, %v372
        %v374 = vrot.slane %v311, 4
        %v375 = vadd.f32 %v311, %v374
        %v376 = vrot.slane %v375, 2
        %v377 = vadd.f32 %v375, %v376
        %v378 = vrot.slane %v377, 1
        %v379 = vadd.f32 %v377, %v378
        %v380 = vmul.f32 %v361, 3.3333333e-06
        %v381 = vmul.f32 %v367, 3.3333333e-06
        %v382 = vmul.f32 %v373, 0.99998665
        %v383 = vmul.f32 %v379, 0.99998665
        %v384 = vadd.f32 %v380, %v382
        %v385 = vadd.f32 %v381, %v383
        %v386 = vadd.f32 %v384, 1e-05
        %v387 = vadd.f32 %v385, 1e-05
        %v388 = vlog2.pop %v386
        %v389 = vmul.f32 %v388, 0.6931472
        %v390 = vlog2.pop %v387
        %v391 = vmul.f32 %v390, 0.6931472
        %v392 = vsub.f32 1.0, %v386
        %v393 = vsub.f32 1.0, %v387
        %v394 = vmul.f32 %v392, %v392
        %v395 = vmul.f32 %v393, %v393
        %v396 = vsub.f32 0.0, %v394
        %v397 = vsub.f32 0.0, %v395
        %v398 = vmul.f32 %v396, %v389
        %v399 = vmul.f32 %v397, %v391
        %v400 = vsel %vm273, %v398, 0.0
        %v401 = vsel %vm274, %v399, 0.0
        %v402 = vld [vmem:[%s255] sm:$0x1]
        %v403 = vsel %vm349, %v400, 0.0
        %v404 = vsel %vm349, %v401, 0.0
        %v405 = vadd.f32 %v403, %v404
        %406 = vadd.xlane.f32.xlu0 %v405
        %v407 = vpop.xlane.xlu0 %406
        %v408 = vrot.slane %v407, 4
        %v409 = vadd.f32 %v407, %v408
        %v410 = vrot.slane %v409, 2
        %v411 = vadd.f32 %v409, %v410
        %v412 = vrot.slane %v411, 1
        %v413 = vadd.f32 %v411, %v412
        %s414 = vtos %v413
        %v415 = vstv %s414
        %v416 = vadd.f32 %v402, %v415
        %vm417 = vcmask 0
        %418 = vst.msk [vmem:[%s255] sm:$0x1] %vm417, %v416
        %p419 = scmp.lt.s32.totalorder %s25, 1
        %s420 = scalar_select %p419, %s25, 1
        %s421 = smul.addr %s420, 4
        %s422 = scalar_lea.vmem %s2, %s421
        %p423 = scmp.lt.s32.totalorder %s25, 1
        %s424 = scalar_select %p423, %s25, 1
        %s425 = scalar_lea.vmem %s3, %s424
        // Predicated region
        $region41: #{tpu_custom_call.1} parent=27 // pred_check
          %p426 = pneg %p107
        $region42: #{tpu_custom_call.1} parent=27 // pred_check_branch
          %428 = sbr.rel (%p426) target = $region44
        $region43: #{tpu_custom_call.1} parent=27 // pred_region
          _
        $region44: #{tpu_custom_call.1} parent=27 // pred_fallthru
          _
        // Predicated region
        $region45: #{tpu_custom_call.1} parent=27 // pred_check
          %p429 = pneg %p133
        $region46: #{tpu_custom_call.1} parent=27 // pred_check_branch
          %431 = sbr.rel (%p429) target = $region48
        $region47: #{tpu_custom_call.1} parent=27 // pred_region
          _
        $region48: #{tpu_custom_call.1} parent=27 // pred_fallthru
          _
      $region28: #{tpu_custom_call.1} parent=5 // pred_fallthru
        _
      %p432 = scmp.le.s32.totalorder 2, %s16
      // Predicated region
      $region49: #{tpu_custom_call.1} parent=5 // pred_check
        %p433 = pneg %p432
      $region50: #{tpu_custom_call.1} parent=5 // pred_check_branch
        %435 = sbr.rel (%p433) target = $region52
      $region51: #{tpu_custom_call.1} parent=5 // pred_region
        %s436 = ssub.s32 %s16, 2
        // Predicated region
        $region53: #{tpu_custom_call.1} parent=51 // pred_check
          %p437 = pneg %p113
        $region54: #{tpu_custom_call.1} parent=51 // pred_check_branch
          %439 = sbr.rel (%p437) target = $region56
        $region55: #{tpu_custom_call.1} parent=51 // pred_region
          %p440 = scmp.lt.s32.totalorder %s27, 1
          %s441 = scalar_select %p440, %s27, 1
          %s442 = smul.addr %s441, 4
          %s443 = scalar_lea.vmem %s2, %s442
        $region56: #{tpu_custom_call.1} parent=51 // pred_fallthru
          _
        // Predicated region
        $region57: #{tpu_custom_call.1} parent=51 // pred_check
          %p444 = pneg %p139
        $region58: #{tpu_custom_call.1} parent=51 // pred_check_branch
          %446 = sbr.rel (%p444) target = $region60
        $region59: #{tpu_custom_call.1} parent=51 // pred_region
          %p447 = scmp.lt.s32.totalorder %s27, 1
          %s448 = scalar_select %p447, %s27, 1
          %s449 = scalar_lea.vmem %s3, %s448
        $region60: #{tpu_custom_call.1} parent=51 // pred_fallthru
          _
      $region52: #{tpu_custom_call.1} parent=5 // pred_fallthru
        _
    $region6: #{tpu_custom_call.1} parent=1 // loop_footer
      %s20 = sadd.s32 1, %s16
    $region7: #{tpu_custom_call.1} parent=1 // loop_footer_branch
      %15 = sbr.rel target = $region3
    $region8: #{tpu_custom_call.1} parent=1 // loop_exit
      _
    %450 = vsyncpa [#allocation3], 1
    %s451 = scalar_lea.sflag [#allocation3], 1
    %452 = vsyncpa %s451, 1
    %453 = vsyncpa [#allocation5], 1
    %s454 = scalar_lea.sflag [#allocation5], 1
    %455 = vsyncpa %s454, 1

</llo_original>
